<compile_context>
chip_gen: v6e
topology: v6e:2x2x1
jax: 0.10.0
libtpu: 0.0.40
codegen_flags: <defaults>
</compile_context>

<pallas_src>
import functools

import jax
import jax.numpy as jnp
from jax.experimental import pallas as pl
from jax.experimental.pallas import tpu as pltpu

_LANE = 128               # MXU / lane alignment for the token (M) axis
_F_ALIGN = 256            # keep F a multiple of 256 (full MXU K on v6e/v7x)
_MAX_TOKEN_TILE = 768     # >= streamed compute-bound threshold on v5e/v7x/v6e
_F_TILE_CANDIDATES = (512, 256)


def _round_up(x, m):
    return (x + m - 1) // m * m


@functools.lru_cache(maxsize=1)
def _vmem_capacity_bytes():
    try:
        return int(pltpu.get_tpu_info().vmem_capacity_bytes)
    except Exception:
        return 64 * 1024 * 1024   # conservative fallback: v7x per-TC VMEM


# --------------------------------------------------------------------------
# Kernels
# --------------------------------------------------------------------------
def _ffn_kernel_resident(x_ref, w1_ref, w2_ref, wup_ref, o_ref):
    """Weights fully VMEM-resident: one pass, no accumulator scratch.

    x_ref  : (tm, H)  activations tile (original dtype; cast in-kernel)
    w1/w2  : (H, Fp)  bf16 gate / value projection weights (whole)
    wup    : (Fp, H)  bf16 up-projection weights (whole)
    o_ref  : (tm, H)  output tile
    """
    x = x_ref[...].astype(w1_ref.dtype)
    p1 = jnp.dot(x, w1_ref[...], preferred_element_type=jnp.float32)
    p2 = jnp.dot(x, w2_ref[...], preferred_element_type=jnp.float32)
    gated = (p1 * jax.nn.sigmoid(p1)) * p2          # SiLU(x1) * x2 in f32
    o_ref[...] = jnp.dot(gated.astype(wup_ref.dtype), wup_ref[...],
                         preferred_element_type=jnp.float32).astype(o_ref.dtype)


def _ffn_kernel_streamed(x_ref, w1_ref, w2_ref, wup_ref, o_ref, acc_ref):
    """F tiled across the last (reduction) grid axis, num_f_tiles >= 2.

    x_ref  : (tm, H)  activations tile (resident across the F axis)
    w1/w2  : (H, tF)  bf16 weight tiles, wup: (tF, H)
    o_ref  : (tm, H)  output tile (written only on the last F step)
    acc_ref: (tm, H)  f32 VMEM accumulator
    """
    fj = pl.program_id(1)
    last = pl.num_programs(1) - 1

    x = x_ref[...].astype(w1_ref.dtype)
    p1 = jnp.dot(x, w1_ref[...], preferred_element_type=jnp.float32)
    p2 = jnp.dot(x, w2_ref[...], preferred_element_type=jnp.float32)
    gated = (p1 * jax.nn.sigmoid(p1)) * p2
    partial = jnp.dot(gated.astype(wup_ref.dtype), wup_ref[...],
                      preferred_element_type=jnp.float32)

    @pl.when(fj == 0)
    def _():                       # first step writes acc directly (no zero-init)
        acc_ref[...] = partial

    @pl.when(jnp.logical_and(fj > 0, fj < last))
    def _():
        acc_ref[...] += partial

    @pl.when(fj == last)
    def _():                       # fuse last partial into the output store
        o_ref[...] = (acc_ref[...] + partial).astype(o_ref.dtype)


# --------------------------------------------------------------------------
# One-time weight preparation (OUTSIDE the hot path)
# --------------------------------------------------------------------------
def prepare_ffn_weights(w_in, w_up, compute_dtype=jnp.bfloat16):
    """Split + transpose + cast + F padding, done once.

    w_in: (2F, H) torch nn.Linear layout; w_up: (H, F) torch nn.Linear layout.
    Returns w1, w2: (H, Fp) and w_up_t: (Fp, H). F is padded to a multiple of
    256 when F >= 256 (padded columns give silu(0)*0 == 0 and hit zero rows of
    w_up_t, so results are exact).
    """
    two_f, hidden = w_in.shape
    f = two_f // 2
    assert w_in.shape == (2 * f, hidden)
    assert w_up.shape == (hidden, f)
    w1 = jnp.asarray(w_in[:f, :].T, dtype=compute_dtype)     # (H, F) gate proj
    w2 = jnp.asarray(w_in[f:, :].T, dtype=compute_dtype)     # (H, F) value proj
    w_up_t = jnp.asarray(w_up.T, dtype=compute_dtype)        # (F, H)
    if f >= _F_ALIGN and f % _F_ALIGN != 0:
        f_p = _round_up(f, _F_ALIGN)
        w1 = jnp.pad(w1, ((0, 0), (0, f_p - f)))
        w2 = jnp.pad(w2, ((0, 0), (0, f_p - f)))
        w_up_t = jnp.pad(w_up_t, ((0, f_p - f), (0, 0)))
    return w1, w2, w_up_t


# --------------------------------------------------------------------------
# VMEM footprint models + tile selection
# --------------------------------------------------------------------------
def _resident_vmem_bytes(tm, hidden, f_p, x_b, w_b, o_b, weight_bufs):
    return (2 * tm * hidden * x_b                 # x tiles (double-buffered)
            + weight_bufs * 3 * hidden * f_p * w_b  # w1 + w2 + w_up, resident
            + 2 * tm * hidden * o_b               # output tiles
            + 3 * tm * f_p * 4)                   # f32 p1/p2/gated intermediates


def _streamed_vmem_bytes(tm, tf, hidden, x_b, w_b, o_b):
    return (2 * tm * hidden * x_b                 # x tiles
            + 2 * 3 * hidden * tf * w_b           # w1 + w2 + w_up tiles (x2 bufs)
            + 2 * tm * hidden * o_b               # output tiles
            + tm * hidden * 4                     # f32 accumulator scratch
            + 3 * tm * tf * 4)                    # f32 p1/p2/gated intermediates


def _pick_streamed_tiles(tokens_aligned, hidden, f_p, x_b, w_b, o_b, budget):
    """Largest token tile that fits VMEM (arithmetic intensity of the streamed
    regime is ~token_tile FLOP per weight byte), preferring a 256/512 F tile."""
    # Keep >=2 token tiles when there is enough work so v7x's two TensorCores
    # both run; never exceed the padded token count or _MAX_TOKEN_TILE.
    if tokens_aligned <= 256:
        tm_cap = tokens_aligned
    else:
        tm_cap = max(256, _round_up(-(-tokens_aligned // 2), _LANE))
    tm_cap = min(tm_cap, _MAX_TOKEN_TILE)

    tm = tm_cap
    while tm >= _LANE:
        for tf in _F_TILE_CANDIDATES:
            if f_p % tf == 0 and f_p // tf >= 2 and \
               _streamed_vmem_bytes(tm, tf, hidden, x_b, w_b, o_b) <= budget:
                return tm, tf
        tm -= _LANE
    # Last resort: smallest aligned tiles (let Mosaic figure the rest out).
    tf = 256 if (f_p % 256 == 0 and f_p // 256 >= 2) else 128
    return _LANE, tf


# --------------------------------------------------------------------------
# Wrapper
# --------------------------------------------------------------------------
def feedforward_pallas(x, w1, w2, w_up_t, *, force_path=None):
    """x: (..., H). w1/w2: (H, Fp), w_up_t: (Fp, H) from prepare_ffn_weights."""
    hidden = x.shape[-1]
    f_p = w1.shape[1]
    assert w1.shape == (hidden, f_p) and w2.shape == (hidden, f_p)
    assert w_up_t.shape == (f_p, hidden)

    orig_shape = x.shape
    out_dtype = x.dtype
    x2d = x.reshape(-1, hidden)            # keep original dtype; cast in-kernel
    tokens = x2d.shape[0]
    tokens_aligned = _round_up(tokens, _LANE)

    x_b = jnp.dtype(x2d.dtype).itemsize
    w_b = jnp.dtype(w1.dtype).itemsize
    o_b = jnp.dtype(out_dtype).itemsize

    vmem_cap = _vmem_capacity_bytes()
    budget = vmem_cap - (8 << 20)          # headroom for Mosaic internals

    tm_res = _LANE                          # resident path: x/out DMA is the
                                            # same total regardless of tm, and
                                            # tm=128 bounds f32 intermediates
    resident_fit = _resident_vmem_bytes(tm_res, hidden, f_p, x_b, w_b, o_b,
                                        weight_bufs=1) <= budget
    use_resident = resident_fit or f_p <= max(_F_TILE_CANDIDATES)
    if force_path == "resident":
        use_resident = True
    elif force_path == "streamed":
        use_resident = False

    flops = 6 * hidden * f_p               # per token: 2 in-proj + 1 up-proj

    if use_resident:
        tm = tm_res
        tokens_p = _round_up(tokens, tm)
        if tokens_p != tokens:
            # TODO(synk): fold the ragged-token pad into the kernel (masked tile).
            x2d = jnp.pad(x2d, ((0, tokens_p - tokens), (0, 0)))
        num_tok_tiles = tokens_p // tm

        # Limit sized for the worst case (double-buffered-weights fallback),
        # capped at physical VMEM minus headroom (fits v7x's 64 MiB).
        worst = _resident_vmem_bytes(tm, hidden, f_p, x_b, w_b, o_b, weight_bufs=2)
        vmem_limit = int(min(max(worst + (16 << 20), 32 << 20),
                             vmem_cap - (8 << 20)))
        cost = pl.CostEstimate(
            flops=tokens_p * flops,
            transcendentals=tokens_p * f_p,
            bytes_accessed=int(tokens_p * hidden * (x_b + o_b)
                               + 3 * hidden * f_p * w_b))

        def call(single_buffer_weights):
            def wspec(shape):
                if single_buffer_weights:
                    # Grid-invariant weights: one VMEM buffer is enough; halves
                    # the resident-weight footprint.
                    return pl.BlockSpec(shape, lambda i: (0, 0),
                                        pipeline_mode=pl.Buffered(1))
                return pl.BlockSpec(shape, lambda i: (0, 0))

            return pl.pallas_call(
                _ffn_kernel_resident,
                out_shape=jax.ShapeDtypeStruct((tokens_p, hidden), out_dtype),
                grid_spec=pltpu.PrefetchScalarGridSpec(
                    num_scalar_prefetch=0,
                    grid=(num_tok_tiles,),
                    in_specs=[
                        pl.BlockSpec((tm, hidden), lambda i: (i, 0)),
                        wspec((hidden, f_p)),
                        wspec((hidden, f_p)),
                        wspec((f_p, hidden)),
                    ],
                    out_specs=pl.BlockSpec((tm, hidden), lambda i: (i, 0)),
                ),
                compiler_params=pltpu.CompilerParams(
                    dimension_semantics=("parallel",),
                    vmem_limit_bytes=vmem_limit,
                ),
                cost_estimate=cost,
            )(x2d, w1, w2, w_up_t)

        try:
            out2d = call(True)
        except Exception:
            # pl.Buffered(1) unsupported on this jax/libtpu -> default buffering.
            out2d = call(False)

    else:
        assert f_p % _F_ALIGN == 0, (
            "streamed FFN path expects the 256-aligned FFN dim produced by "
            "prepare_ffn_weights")
        tm, tf = _pick_streamed_tiles(tokens_aligned, hidden, f_p,
                                      x_b, w_b, o_b, budget)
        tokens_p = _round_up(tokens, tm)
        if tokens_p != tokens:
            x2d = jnp.pad(x2d, ((0, tokens_p - tokens), (0, 0)))
        num_tok_tiles = tokens_p // tm
        num_f_tiles = f_p // tf

        vmem_est = _streamed_vmem_bytes(tm, tf, hidden, x_b, w_b, o_b)
        vmem_limit = int(min(max(vmem_est + (16 << 20), 32 << 20),
                             vmem_cap - (8 << 20)))
        cost = pl.CostEstimate(
            flops=tokens_p * flops,
            transcendentals=tokens_p * f_p,
            bytes_accessed=int(tokens_p * hidden * (x_b + o_b)
                               + num_tok_tiles * 3 * hidden * f_p * w_b))

        out2d = pl.pallas_call(
            _ffn_kernel_streamed,
            out_shape=jax.ShapeDtypeStruct((tokens_p, hidden), out_dtype),
            grid_spec=pltpu.PrefetchScalarGridSpec(
                num_scalar_prefetch=0,
                grid=(num_tok_tiles, num_f_tiles),     # reduction (F) axis last
                in_specs=[
                    pl.BlockSpec((tm, hidden), lambda i, j: (i, 0)),
                    pl.BlockSpec((hidden, tf), lambda i, j: (0, j)),
                    pl.BlockSpec((hidden, tf), lambda i, j: (0, j)),
                    pl.BlockSpec((tf, hidden), lambda i, j: (j, 0)),
                ],
                out_specs=pl.BlockSpec((tm, hidden), lambda i, j: (i, 0)),
                scratch_shapes=[pltpu.VMEM((tm, hidden), jnp.float32)],
            ),
            compiler_params=pltpu.CompilerParams(
                dimension_semantics=("parallel", "arbitrary"),
                vmem_limit_bytes=vmem_limit,
            ),
            cost_estimate=cost,
        )(x2d, w1, w2, w_up_t)

    return out2d[:tokens].reshape(orig_shape)


def feedforward_reference(x, w_in, w_up):
    """Pure-JAX f32 reference matching the PyTorch module (eval mode)."""
    proj = x @ w_in.T
    f = w_in.shape[0] // 2
    x1, x2 = proj[..., :f], proj[..., f:]
    return (jax.nn.silu(x1) * x2) @ w_up.T


if __name__ == "__main__":
    def run_case(batch, seq, hidden_size, ffn_hidden_size, key, force_path=None):
        k_x, k_in, k_up = jax.random.split(key, 3)
        x = jax.random.normal(k_x, (batch, seq, hidden_size), dtype=jnp.float32)
        # torch nn.Linear weight layout: (out_features, in_features)
        w_in = jax.random.normal(k_in, (2 * ffn_hidden_size, hidden_size),
                                 dtype=jnp.float32) * 0.05
        w_up = jax.random.normal(k_up, (hidden_size, ffn_hidden_size),
                                 dtype=jnp.float32) * 0.05
        w1, w2, w_up_t = prepare_ffn_weights(w_in, w_up)     # one-time prep
        out = jax.block_until_ready(
            feedforward_pallas(x, w1, w2, w_up_t, force_path=force_path))
        ref = feedforward_reference(x, w_in, w_up)
        assert out.shape == ref.shape == (batch, seq, hidden_size)
        # bf16 MXU operands with f32 accumulation -> bf16-level tolerance.
        assert jnp.allclose(out, ref, atol=1e-2, rtol=1e-2), \
            f"mismatch vs reference (path={force_path})"

    key = jax.random.PRNGKey(0)
    k1, k2 = jax.random.split(key)
    # config: hidden_size=32, ffn_hidden_size=64, dropout_rate=0.1 (identity at eval)
    run_case(2, 8, 32, 64, k1)                          # resident-weight path
    # Exercise the tiled-F accumulator path (F padded 640 -> 768, 3 F tiles).
    run_case(2, 8, 32, 640, k2, force_path="streamed")
    print("KERNEL_OK")
</pallas_src>

<mosaic_0001>
module attributes {stable_mosaic.version = 11 : i64} {
  func.func @_ffn_kernel_resident(%arg0: i32, %arg1: memref<128x32xf32, #tpu.memory_space<vmem>>, %arg2: memref<32x64xbf16, #tpu.memory_space<vmem>>, %arg3: memref<32x64xbf16, #tpu.memory_space<vmem>>, %arg4: memref<64x32xbf16, #tpu.memory_space<vmem>>, %arg5: memref<128x32xf32, #tpu.memory_space<vmem>>) attributes {dimension_semantics = [#tpu.dimension_semantics<parallel>], iteration_bounds = array<i64: 1>, scalar_prefetch = 0 : i64, scratch_operands = 0 : i64, tpu.core_type = #tpu.core_type<tc>, window_params = [{transform_indices = @transform_0, window_bounds = array<i64: 128, 32>}, {pipeline_mode = #tpu.pipeline_mode<synchronous>, transform_indices = @transform_1, window_bounds = array<i64: 32, 64>}, {pipeline_mode = #tpu.pipeline_mode<synchronous>, transform_indices = @transform_2, window_bounds = array<i64: 32, 64>}, {pipeline_mode = #tpu.pipeline_mode<synchronous>, transform_indices = @transform_3, window_bounds = array<i64: 64, 32>}, {transform_indices = @transform_4, window_bounds = array<i64: 128, 32>}]} {
    %c0 = arith.constant 0 : index
    %c0_0 = arith.constant 0 : index
    %0 = vector.load %arg1[%c0, %c0_0] : memref<128x32xf32, #tpu.memory_space<vmem>>, vector<128x32xf32>
    %1 = arith.truncf %0 : vector<128x32xf32> to vector<128x32xbf16>
    %c0_1 = arith.constant 0 : index
    %c0_2 = arith.constant 0 : index
    %2 = vector.load %arg2[%c0_1, %c0_2] : memref<32x64xbf16, #tpu.memory_space<vmem>>, vector<32x64xbf16>
    %cst = arith.constant dense<0.000000e+00> : vector<128x64xf32>
    %3 = tpu.matmul %1, %2, %cst {dimension_numbers = #tpu.dot_dimension_numbers<[1], [0], [0], [1], [0, 0, 1, 1], [], []>} : vector<128x32xbf16>, vector<32x64xbf16>, vector<128x64xf32> -> vector<128x64xf32>
    %c0_3 = arith.constant 0 : index
    %c0_4 = arith.constant 0 : index
    %4 = vector.load %arg3[%c0_3, %c0_4] : memref<32x64xbf16, #tpu.memory_space<vmem>>, vector<32x64xbf16>
    %cst_5 = arith.constant dense<0.000000e+00> : vector<128x64xf32>
    %5 = tpu.matmul %1, %4, %cst_5 {dimension_numbers = #tpu.dot_dimension_numbers<[1], [0], [0], [1], [0, 0, 1, 1], [], []>} : vector<128x32xbf16>, vector<32x64xbf16>, vector<128x64xf32> -> vector<128x64xf32>
    %6 = arith.negf %3 : vector<128x64xf32>
    %7 = math.exp %6 : vector<128x64xf32>
    %cst_6 = arith.constant 1.000000e+00 : f32
    %8 = vector.broadcast %cst_6 : f32 to vector<128x64xf32>
    %9 = arith.addf %8, %7 : vector<128x64xf32>
    %10 = arith.divf %8, %9 : vector<128x64xf32>
    %11 = arith.mulf %3, %10 : vector<128x64xf32>
    %12 = arith.mulf %11, %5 : vector<128x64xf32>
    %13 = arith.truncf %12 : vector<128x64xf32> to vector<128x64xbf16>
    %c0_7 = arith.constant 0 : index
    %c0_8 = arith.constant 0 : index
    %14 = vector.load %arg4[%c0_7, %c0_8] : memref<64x32xbf16, #tpu.memory_space<vmem>>, vector<64x32xbf16>
    %cst_9 = arith.constant dense<0.000000e+00> : vector<128x32xf32>
    %15 = tpu.matmul %13, %14, %cst_9 {dimension_numbers = #tpu.dot_dimension_numbers<[1], [0], [0], [1], [0, 0, 1, 1], [], []>} : vector<128x64xbf16>, vector<64x32xbf16>, vector<128x32xf32> -> vector<128x32xf32>
    %c0_10 = arith.constant 0 : index
    %c0_11 = arith.constant 0 : index
    %16 = vector.load %arg5[%c0_10, %c0_11] : memref<128x32xf32, #tpu.memory_space<vmem>>, vector<128x32xf32>
    tpu.vector_store %arg5[%c0_10, %c0_11], %15 {strides = array<i32>} : memref<128x32xf32, #tpu.memory_space<vmem>>, vector<128x32xf32>,
    return
  }
  func.func @transform_0(%arg0: i32) -> (i32, i32) {
    %c0_i32 = arith.constant 0 : i32
    %c0_i32_0 = arith.constant 0 : i32
    return %arg0, %c0_i32 : i32, i32
  }
  func.func @transform_1(%arg0: i32) -> (i32, i32) {
    %c0_i32 = arith.constant 0 : i32
    %c0_i32_0 = arith.constant 0 : i32
    %c0_i32_1 = arith.constant 0 : i32
    return %c0_i32, %c0_i32_0 : i32, i32
  }
  func.func @transform_2(%arg0: i32) -> (i32, i32) {
    %c0_i32 = arith.constant 0 : i32
    %c0_i32_0 = arith.constant 0 : i32
    %c0_i32_1 = arith.constant 0 : i32
    return %c0_i32, %c0_i32_0 : i32, i32
  }
  func.func @transform_3(%arg0: i32) -> (i32, i32) {
    %c0_i32 = arith.constant 0 : i32
    %c0_i32_0 = arith.constant 0 : i32
    %c0_i32_1 = arith.constant 0 : i32
    return %c0_i32, %c0_i32_0 : i32, i32
  }
  func.func @transform_4(%arg0: i32) -> (i32, i32) {
    %c0_i32 = arith.constant 0 : i32
    %c0_i32_0 = arith.constant 0 : i32
    return %arg0, %c0_i32 : i32, i32
  }
}

module attributes {stable_mosaic.version = 11 : i64} {
  func.func @_ffn_kernel_resident(%arg0: i32, %arg1: memref<128x32xf32, #tpu.memory_space<vmem>>, %arg2: memref<32x64xbf16, #tpu.memory_space<vmem>>, %arg3: memref<32x64xbf16, #tpu.memory_space<vmem>>, %arg4: memref<64x32xbf16, #tpu.memory_space<vmem>>, %arg5: memref<128x32xf32, #tpu.memory_space<vmem>>) attributes {dimension_semantics = [#tpu.dimension_semantics<parallel>], iteration_bounds = array<i64: 1>, scalar_prefetch = 0 : i64, scratch_operands = 0 : i64, tpu.core_type = #tpu.core_type<tc>, window_params = [{transform_indices = @transform_0, window_bounds = array<i64: 128, 32>}, {pipeline_mode = #tpu.pipeline_mode<synchronous>, transform_indices = @transform_1, window_bounds = array<i64: 32, 64>}, {pipeline_mode = #tpu.pipeline_mode<synchronous>, transform_indices = @transform_2, window_bounds = array<i64: 32, 64>}, {pipeline_mode = #tpu.pipeline_mode<synchronous>, transform_indices = @transform_3, window_bounds = array<i64: 64, 32>}, {transform_indices = @transform_4, window_bounds = array<i64: 128, 32>}]} {
    %c0 = arith.constant 0 : index
    %c0_0 = arith.constant 0 : index
    %0 = vector.load %arg1[%c0, %c0_0] : memref<128x32xf32, #tpu.memory_space<vmem>>, vector<128x32xf32>
    %1 = arith.truncf %0 : vector<128x32xf32> to vector<128x32xbf16>
    %c0_1 = arith.constant 0 : index
    %c0_2 = arith.constant 0 : index
    %2 = vector.load %arg2[%c0_1, %c0_2] : memref<32x64xbf16, #tpu.memory_space<vmem>>, vector<32x64xbf16>
    %cst = arith.constant dense<0.000000e+00> : vector<128x64xf32>
    %3 = tpu.matmul %1, %2, %cst {dimension_numbers = #tpu.dot_dimension_numbers<[1], [0], [0], [1], [0, 0, 1, 1], [], []>} : vector<128x32xbf16>, vector<32x64xbf16>, vector<128x64xf32> -> vector<128x64xf32>
    %c0_3 = arith.constant 0 : index
    %c0_4 = arith.constant 0 : index
    %4 = vector.load %arg3[%c0_3, %c0_4] : memref<32x64xbf16, #tpu.memory_space<vmem>>, vector<32x64xbf16>
    %cst_5 = arith.constant dense<0.000000e+00> : vector<128x64xf32>
    %5 = tpu.matmul %1, %4, %cst_5 {dimension_numbers = #tpu.dot_dimension_numbers<[1], [0], [0], [1], [0, 0, 1, 1], [], []>} : vector<128x32xbf16>, vector<32x64xbf16>, vector<128x64xf32> -> vector<128x64xf32>
    %6 = arith.negf %3 : vector<128x64xf32>
    %7 = math.exp %6 : vector<128x64xf32>
    %cst_6 = arith.constant 1.000000e+00 : f32
    %8 = vector.broadcast %cst_6 : f32 to vector<128x64xf32>
    %9 = arith.addf %8, %7 : vector<128x64xf32>
    %10 = arith.divf %8, %9 : vector<128x64xf32>
    %11 = arith.mulf %3, %10 : vector<128x64xf32>
    %12 = arith.mulf %11, %5 : vector<128x64xf32>
    %13 = arith.truncf %12 : vector<128x64xf32> to vector<128x64xbf16>
    %c0_7 = arith.constant 0 : index
    %c0_8 = arith.constant 0 : index
    %14 = vector.load %arg4[%c0_7, %c0_8] : memref<64x32xbf16, #tpu.memory_space<vmem>>, vector<64x32xbf16>
    %cst_9 = arith.constant dense<0.000000e+00> : vector<128x32xf32>
    %15 = tpu.matmul %13, %14, %cst_9 {dimension_numbers = #tpu.dot_dimension_numbers<[1], [0], [0], [1], [0, 0, 1, 1], [], []>} : vector<128x64xbf16>, vector<64x32xbf16>, vector<128x32xf32> -> vector<128x32xf32>
    %c0_10 = arith.constant 0 : index
    %c0_11 = arith.constant 0 : index
    %16 = vector.load %arg5[%c0_10, %c0_11] : memref<128x32xf32, #tpu.memory_space<vmem>>, vector<128x32xf32>
    tpu.vector_store %arg5[%c0_10, %c0_11], %15 {strides = array<i32>} : memref<128x32xf32, #tpu.memory_space<vmem>>, vector<128x32xf32>,
    return
  }
  func.func @transform_0(%arg0: i32) -> (i32, i32) {
    %c0_i32 = arith.constant 0 : i32
    %c0_i32_0 = arith.constant 0 : i32
    return %arg0, %c0_i32 : i32, i32
  }
  func.func @transform_1(%arg0: i32) -> (i32, i32) {
    %c0_i32 = arith.constant 0 : i32
    %c0_i32_0 = arith.constant 0 : i32
    %c0_i32_1 = arith.constant 0 : i32
    return %c0_i32, %c0_i32_0 : i32, i32
  }
  func.func @transform_2(%arg0: i32) -> (i32, i32) {
    %c0_i32 = arith.constant 0 : i32
    %c0_i32_0 = arith.constant 0 : i32
    %c0_i32_1 = arith.constant 0 : i32
    return %c0_i32, %c0_i32_0 : i32, i32
  }
  func.func @transform_3(%arg0: i32) -> (i32, i32) {
    %c0_i32 = arith.constant 0 : i32
    %c0_i32_0 = arith.constant 0 : i32
    %c0_i32_1 = arith.constant 0 : i32
    return %c0_i32, %c0_i32_0 : i32, i32
  }
  func.func @transform_4(%arg0: i32) -> (i32, i32) {
    %c0_i32 = arith.constant 0 : i32
    %c0_i32_0 = arith.constant 0 : i32
    return %arg0, %c0_i32 : i32, i32
  }
}

</mosaic_0001>

<llo_original>
// kernel: tpu_custom_call.1
$region0: #{tpu_custom_call.1}
  #allocation0 [shape = 'u32[]', space=smem, size = 0x4, offset = 0x4, fixed_abs, tag = 'smem constant byte address 0x4 - core index']
  #allocation1 [shape = 'u32[144,128]{1,0:T(1,128)}', space=vmem, size = 0x12000, scoped, tag = 'internal scratch']
  %s0 = inlined_call_operand.vmem [shape: f32[128,32], index: 0, kind: input, shape index: {}]
  %s1 = inlined_call_operand.vmem [shape: bf16[32,64], index: 1, kind: input, shape index: {}]
  %s2 = inlined_call_operand.vmem [shape: bf16[32,64], index: 2, kind: input, shape index: {}]
  %s3 = inlined_call_operand.vmem [shape: bf16[64,32], index: 3, kind: input, shape index: {}]
  %s4 = inlined_call_operand.vmem [shape: f32[128,32], index: 4, kind: output, shape index: {}]
  %s5 = sld [smem:[#allocation0]]
  $region26: #{tpu_custom_call.1} parent=0
    _
  %s7 = ssub.s32 1, %s5
  %s8 = scalar_select 0, %s7, %s5
  // Predicated region
  $region2: #{tpu_custom_call.1} parent=0 // pred_check
    _
  $region3: #{tpu_custom_call.1} parent=0 // pred_check_branch
    %10 = sbr.rel (0) target = $region5
  $region4: #{tpu_custom_call.1} parent=0 // pred_region
    _
  $region5: #{tpu_custom_call.1} parent=0 // pred_fallthru
    _
  // Predicated region
  $region6: #{tpu_custom_call.1} parent=0 // pred_check
    _
  $region7: #{tpu_custom_call.1} parent=0 // pred_check_branch
    %12 = sbr.rel (0) target = $region9
  $region8: #{tpu_custom_call.1} parent=0 // pred_region
    _
  $region9: #{tpu_custom_call.1} parent=0 // pred_fallthru
    _
  // Predicated region
  $region10: #{tpu_custom_call.1} parent=0 // pred_check
    _
  $region11: #{tpu_custom_call.1} parent=0 // pred_check_branch
    %14 = sbr.rel (0) target = $region13
  $region12: #{tpu_custom_call.1} parent=0 // pred_region
    _
  $region13: #{tpu_custom_call.1} parent=0 // pred_fallthru
    _
  // Predicated region
  $region14: #{tpu_custom_call.1} parent=0 // pred_check
    _
  $region15: #{tpu_custom_call.1} parent=0 // pred_check_branch
    %16 = sbr.rel (0) target = $region17
  $region16: #{tpu_custom_call.1} parent=0 // pred_region
    _
  $region17: #{tpu_custom_call.1} parent=0 // pred_fallthru
    _
  %v18 = vld [vmem:[%s0] sm:$0xff]
  %v19 = vld [vmem:[%s0 + $0x8] sm:$0xff]
  %v20 = vld [vmem:[%s0 + $0x10] sm:$0xff]
  %v21 = vld [vmem:[%s0 + $0x18] sm:$0xff]
  %v22 = vld [vmem:[%s0 + $0x20] sm:$0xff]
  %v23 = vld [vmem:[%s0 + $0x28] sm:$0xff]
  %v24 = vld [vmem:[%s0 + $0x30] sm:$0xff]
  %v25 = vld [vmem:[%s0 + $0x38] sm:$0xff]
  %v26 = vld [vmem:[%s0 + $0x40] sm:$0xff]
  %v27 = vld [vmem:[%s0 + $0x48] sm:$0xff]
  %v28 = vld [vmem:[%s0 + $0x50] sm:$0xff]
  %v29 = vld [vmem:[%s0 + $0x58] sm:$0xff]
  %v30 = vld [vmem:[%s0 + $0x60] sm:$0xff]
  %v31 = vld [vmem:[%s0 + $0x68] sm:$0xff]
  %v32 = vld [vmem:[%s0 + $0x70] sm:$0xff]
  %v33 = vld [vmem:[%s0 + $0x78] sm:$0xff]
  %v34 = vpack.c.bf16 %v19, %v18
  %v35 = vpack.c.bf16 %v21, %v20
  %v36 = vpack.c.bf16 %v23, %v22
  %v37 = vpack.c.bf16 %v25, %v24
  %v38 = vpack.c.bf16 %v27, %v26
  %v39 = vpack.c.bf16 %v29, %v28
  %v40 = vpack.c.bf16 %v31, %v30
  %v41 = vpack.c.bf16 %v33, %v32
  %v42 = vld [vmem:[%s1] sm:$0xf]
  %v43 = vld [vmem:[%s1 + $0x4] sm:$0xf]
  %v44 = vld [vmem:[%s1 + $0x8] sm:$0xf]
  %v45 = vld [vmem:[%s1 + $0xc] sm:$0xf]
  %v50 = vunpack.c.l.b16 %v42
  %v51 = vunpack.c.l.b16 %v43
  %v52 = vunpack.c.l.b16 %v44
  %v53 = vunpack.c.l.b16 %v45
  %v54 = vpack.c.b16 %v51, %v50
  %v55 = vpack.c.b16 %v53, %v52
  %vm58 = vcmask 261120
  %v60 = vsel %vm58, %v34, 0
  %v63 = vsel %vm58, %v35, 0
  %v66 = vsel %vm58, %v36, 0
  %v69 = vsel %vm58, %v37, 0
  %v72 = vsel %vm58, %v38, 0
  %v75 = vsel %vm58, %v39, 0
  %v78 = vsel %vm58, %v40, 0
  %v81 = vsel %vm58, %v41, 0
  %83 = vmatprep.subr.bf16.mxu0 0
  %84 = vmatpush1.bf16.msra.mxu0 0
  %85 = vmatprep.subr.bf16.mxu0 0
  %86 = vmatpush1.bf16.msra.mxu0 0
  %87 = vmatprep.subr.bf16.mxu0 0
  %88 = vmatpush1.bf16.msra.mxu0 0
  %89 = vmatprep.subr.bf16.mxu0 0
  %90 = vmatpush1.bf16.msra.mxu0 0
  %91 = vmatprep.subr.bf16.mxu0 0
  %92 = vmatpush1.bf16.msra.mxu0 0
  %93 = vmatprep.subr.bf16.mxu0 0
  %94 = vmatpush1.bf16.msra.mxu0 0
  %95 = vmatprep.subr.bf16.mxu0 0
  %96 = vmatpush1.bf16.msra.mxu0 %v55
  %97 = vmatprep.subr.bf16.mxu0 0
  %98 = vmatpush1.bf16.msra.mxu0 %v54
  %99 = vmatprep.subr.bf16.mxu0 0
  %100 = vmatpush2.bf16.msra.mxu0 0
  %101 = vmatprep.subr.bf16.mxu0 0
  %102 = vmatpush2.bf16.msra.mxu0 0
  %103 = vmatprep.subr.bf16.mxu0 0
  %104 = vmatpush2.bf16.msra.mxu0 0
  %105 = vmatprep.subr.bf16.mxu0 0
  %106 = vmatpush2.bf16.msra.mxu0 0
  %107 = vmatprep.subr.bf16.mxu0 0
  %108 = vmatpush2.bf16.msra.mxu0 0
  %109 = vmatprep.subr.bf16.mxu0 0
  %110 = vmatpush2.bf16.msra.mxu0 0
  %111 = vmatprep.subr.bf16.mxu0 0
  %112 = vmatpush2.bf16.msra.mxu0 0
  %113 = vmatprep.subr.bf16.mxu0 0
  %114 = vmatpush2.bf16.msra.mxu0 0
  %115 = vmatprep.mubr.bf16.mxu0 0
  %116 = vmatmul.mubr.bf16.gmra.mxu0 %v60
  %v117 = vpop.f32.mrf.mxu0
  %v118 = vadd.f32 0.0, %v117
  %v119 = vpop.f32.mrf.mxu0
  %v120 = vpop.f32.mrf.mxu0
  %v121 = vadd.f32 0.0, %v120
  %v122 = vpop.f32.mrf.mxu0
  %123 = vmatprep.mubr.bf16.mxu0 0
  %124 = vmatmul.mubr.bf16.gmra.mxu0 %v63
  %v125 = vpop.f32.mrf.mxu0
  %v126 = vadd.f32 0.0, %v125
  %v127 = vpop.f32.mrf.mxu0
  %v128 = vpop.f32.mrf.mxu0
  %v129 = vadd.f32 0.0, %v128
  %v130 = vpop.f32.mrf.mxu0
  %131 = vmatprep.mubr.bf16.mxu0 0
  %132 = vmatmul.mubr.bf16.gmra.mxu0 %v66
  %v133 = vpop.f32.mrf.mxu0
  %v134 = vadd.f32 0.0, %v133
  %v135 = vpop.f32.mrf.mxu0
  %v136 = vpop.f32.mrf.mxu0
  %v137 = vadd.f32 0.0, %v136
  %v138 = vpop.f32.mrf.mxu0
  %139 = vmatprep.mubr.bf16.mxu0 0
  %140 = vmatmul.mubr.bf16.gmra.mxu0 %v69
  %v141 = vpop.f32.mrf.mxu0
  %v142 = vadd.f32 0.0, %v141
  %v143 = vpop.f32.mrf.mxu0
  %v144 = vpop.f32.mrf.mxu0
  %v145 = vadd.f32 0.0, %v144
  %v146 = vpop.f32.mrf.mxu0
  %147 = vmatprep.mubr.bf16.mxu0 0
  %148 = vmatmul.mubr.bf16.gmra.mxu0 %v72
  %v149 = vpop.f32.mrf.mxu0
  %v150 = vadd.f32 0.0, %v149
  %v151 = vpop.f32.mrf.mxu0
  %v152 = vpop.f32.mrf.mxu0
  %v153 = vadd.f32 0.0, %v152
  %v154 = vpop.f32.mrf.mxu0
  %155 = vmatprep.mubr.bf16.mxu0 0
  %156 = vmatmul.mubr.bf16.gmra.mxu0 %v75
  %v157 = vpop.f32.mrf.mxu0
  %v158 = vadd.f32 0.0, %v157
  %v159 = vpop.f32.mrf.mxu0
  %v160 = vpop.f32.mrf.mxu0
  %v161 = vadd.f32 0.0, %v160
  %v162 = vpop.f32.mrf.mxu0
  %163 = vmatprep.mubr.bf16.mxu0 0
  %164 = vmatmul.mubr.bf16.gmra.mxu0 %v78
  %v165 = vpop.f32.mrf.mxu0
  %v166 = vadd.f32 0.0, %v165
  %v167 = vpop.f32.mrf.mxu0
  %v168 = vpop.f32.mrf.mxu0
  %v169 = vadd.f32 0.0, %v168
  %v170 = vpop.f32.mrf.mxu0
  %171 = vmatprep.mubr.bf16.mxu0 0
  %172 = vmatmul.mubr.bf16.gmra.mxu0 %v81
  %v173 = vpop.f32.mrf.mxu0
  %v174 = vadd.f32 0.0, %v173
  %v175 = vpop.f32.mrf.mxu0
  %v176 = vpop.f32.mrf.mxu0
  %v177 = vadd.f32 0.0, %v176
  %v178 = vpop.f32.mrf.mxu0
  %179 = vdwg.mxu0
  %v180 = vld [vmem:[%s2] sm:$0xf]
  %v181 = vld [vmem:[%s2 + $0x4] sm:$0xf]
  %v182 = vld [vmem:[%s2 + $0x8] sm:$0xf]
  %v183 = vld [vmem:[%s2 + $0xc] sm:$0xf]
  %v188 = vunpack.c.l.b16 %v180
  %v189 = vunpack.c.l.b16 %v181
  %v190 = vunpack.c.l.b16 %v182
  %v191 = vunpack.c.l.b16 %v183
  %v192 = vpack.c.b16 %v189, %v188
  %v193 = vpack.c.b16 %v191, %v190
  %196 = vmatprep.subr.bf16.mxu0 0
  %197 = vmatpush1.bf16.msra.mxu0 0
  %198 = vmatprep.subr.bf16.mxu0 0
  %199 = vmatpush1.bf16.msra.mxu0 0
  %200 = vmatprep.subr.bf16.mxu0 0
  %201 = vmatpush1.bf16.msra.mxu0 0
  %202 = vmatprep.subr.bf16.mxu0 0
  %203 = vmatpush1.bf16.msra.mxu0 0
  %204 = vmatprep.subr.bf16.mxu0 0
  %205 = vmatpush1.bf16.msra.mxu0 0
  %206 = vmatprep.subr.bf16.mxu0 0
  %207 = vmatpush1.bf16.msra.mxu0 0
  %208 = vmatprep.subr.bf16.mxu0 0
  %209 = vmatpush1.bf16.msra.mxu0 %v193
  %210 = vmatprep.subr.bf16.mxu0 0
  %211 = vmatpush1.bf16.msra.mxu0 %v192
  %212 = vmatprep.subr.bf16.mxu0 0
  %213 = vmatpush2.bf16.msra.mxu0 0
  %214 = vmatprep.subr.bf16.mxu0 0
  %215 = vmatpush2.bf16.msra.mxu0 0
  %216 = vmatprep.subr.bf16.mxu0 0
  %217 = vmatpush2.bf16.msra.mxu0 0
  %218 = vmatprep.subr.bf16.mxu0 0
  %219 = vmatpush2.bf16.msra.mxu0 0
  %220 = vmatprep.subr.bf16.mxu0 0
  %221 = vmatpush2.bf16.msra.mxu0 0
  %222 = vmatprep.subr.bf16.mxu0 0
  %223 = vmatpush2.bf16.msra.mxu0 0
  %224 = vmatprep.subr.bf16.mxu0 0
  %225 = vmatpush2.bf16.msra.mxu0 0
  %226 = vmatprep.subr.bf16.mxu0 0
  %227 = vmatpush2.bf16.msra.mxu0 0
  %228 = vmatprep.mubr.bf16.mxu0 0
  %229 = vmatmul.mubr.bf16.gmra.mxu0 %v60
  %v230 = vpop.f32.mrf.mxu0
  %v231 = vadd.f32 0.0, %v230
  %v232 = vpop.f32.mrf.mxu0
  %v233 = vpop.f32.mrf.mxu0
  %v234 = vadd.f32 0.0, %v233
  %v235 = vpop.f32.mrf.mxu0
  %236 = vmatprep.mubr.bf16.mxu0 0
  %237 = vmatmul.mubr.bf16.gmra.mxu0 %v63
  %v238 = vpop.f32.mrf.mxu0
  %v239 = vadd.f32 0.0, %v238
  %v240 = vpop.f32.mrf.mxu0
  %v241 = vpop.f32.mrf.mxu0
  %v242 = vadd.f32 0.0, %v241
  %v243 = vpop.f32.mrf.mxu0
  %244 = vmatprep.mubr.bf16.mxu0 0
  %245 = vmatmul.mubr.bf16.gmra.mxu0 %v66
  %v246 = vpop.f32.mrf.mxu0
  %v247 = vadd.f32 0.0, %v246
  %v248 = vpop.f32.mrf.mxu0
  %v249 = vpop.f32.mrf.mxu0
  %v250 = vadd.f32 0.0, %v249
  %v251 = vpop.f32.mrf.mxu0
  %252 = vmatprep.mubr.bf16.mxu0 0
  %253 = vmatmul.mubr.bf16.gmra.mxu0 %v69
  %v254 = vpop.f32.mrf.mxu0
  %v255 = vadd.f32 0.0, %v254
  %v256 = vpop.f32.mrf.mxu0
  %v257 = vpop.f32.mrf.mxu0
  %v258 = vadd.f32 0.0, %v257
  %v259 = vpop.f32.mrf.mxu0
  %260 = vmatprep.mubr.bf16.mxu0 0
  %261 = vmatmul.mubr.bf16.gmra.mxu0 %v72
  %v262 = vpop.f32.mrf.mxu0
  %v263 = vadd.f32 0.0, %v262
  %v264 = vpop.f32.mrf.mxu0
  %v265 = vpop.f32.mrf.mxu0
  %v266 = vadd.f32 0.0, %v265
  %v267 = vpop.f32.mrf.mxu0
  %268 = vmatprep.mubr.bf16.mxu0 0
  %269 = vmatmul.mubr.bf16.gmra.mxu0 %v75
  %v270 = vpop.f32.mrf.mxu0
  %v271 = vadd.f32 0.0, %v270
  %v272 = vpop.f32.mrf.mxu0
  %v273 = vpop.f32.mrf.mxu0
  %v274 = vadd.f32 0.0, %v273
  %v275 = vpop.f32.mrf.mxu0
  %276 = vmatprep.mubr.bf16.mxu0 0
  %277 = vmatmul.mubr.bf16.gmra.mxu0 %v78
  %v278 = vpop.f32.mrf.mxu0
  %v279 = vadd.f32 0.0, %v278
  %v280 = vpop.f32.mrf.mxu0
  %v281 = vpop.f32.mrf.mxu0
  %v282 = vadd.f32 0.0, %v281
  %v283 = vpop.f32.mrf.mxu0
  %284 = vmatprep.mubr.bf16.mxu0 0
  %285 = vmatmul.mubr.bf16.gmra.mxu0 %v81
  %v286 = vpop.f32.mrf.mxu0
  %v287 = vadd.f32 0.0, %v286
  %v288 = vpop.f32.mrf.mxu0
  %v289 = vpop.f32.mrf.mxu0
  %v290 = vadd.f32 0.0, %v289
  %v291 = vpop.f32.mrf.mxu0
  %292 = vdwg.mxu0
  %v293 = vxor.u32 %v118, 2147483648
  %v294 = vxor.u32 %v121, 2147483648
  %v295 = vxor.u32 %v126, 2147483648
  %v296 = vxor.u32 %v129, 2147483648
  %v297 = vxor.u32 %v134, 2147483648
  %v298 = vxor.u32 %v137, 2147483648
  %v299 = vxor.u32 %v142, 2147483648
  %v300 = vxor.u32 %v145, 2147483648
  %v301 = vxor.u32 %v150, 2147483648
  %v302 = vxor.u32 %v153, 2147483648
  %v303 = vxor.u32 %v158, 2147483648
  %v304 = vxor.u32 %v161, 2147483648
  %v305 = vxor.u32 %v166, 2147483648
  %v306 = vxor.u32 %v169, 2147483648
  %v307 = vxor.u32 %v174, 2147483648
  %v308 = vxor.u32 %v177, 2147483648
  %v309 = vmul.f32 %v293, 1.442695
  %v310 = vpow.pop %v309
  %v311 = vmul.f32 %v294, 1.442695
  %v312 = vpow.pop %v311
  %v313 = vmul.f32 %v295, 1.442695
  %v314 = vpow.pop %v313
  %v315 = vmul.f32 %v296, 1.442695
  %v316 = vpow.pop %v315
  %v317 = vmul.f32 %v297, 1.442695
  %v318 = vpow.pop %v317
  %v319 = vmul.f32 %v298, 1.442695
  %v320 = vpow.pop %v319
  %v321 = vmul.f32 %v299, 1.442695
  %v322 = vpow.pop %v321
  %v323 = vmul.f32 %v300, 1.442695
  %v324 = vpow.pop %v323
  %v325 = vmul.f32 %v301, 1.442695
  %v326 = vpow.pop %v325
  %v327 = vmul.f32 %v302, 1.442695
  %v328 = vpow.pop %v327
  %v329 = vmul.f32 %v303, 1.442695
  %v330 = vpow.pop %v329
  %v331 = vmul.f32 %v304, 1.442695
  %v332 = vpow.pop %v331
  %v333 = vmul.f32 %v305, 1.442695
  %v334 = vpow.pop %v333
  %v335 = vmul.f32 %v306, 1.442695
  %v336 = vpow.pop %v335
  %v337 = vmul.f32 %v307, 1.442695
  %v338 = vpow.pop %v337
  %v339 = vmul.f32 %v308, 1.442695
  %v340 = vpow.pop %v339
  %v341 = vadd.f32 %v310, 1.0
  %v342 = vadd.f32 %v312, 1.0
  %v343 = vadd.f32 %v314, 1.0
  %v344 = vadd.f32 %v316, 1.0
  %v345 = vadd.f32 %v318, 1.0
  %v346 = vadd.f32 %v320, 1.0
  %v347 = vadd.f32 %v322, 1.0
  %v348 = vadd.f32 %v324, 1.0
  %v349 = vadd.f32 %v326, 1.0
  %v350 = vadd.f32 %v328, 1.0
  %v351 = vadd.f32 %v330, 1.0
  %v352 = vadd.f32 %v332, 1.0
  %v353 = vadd.f32 %v334, 1.0
  %v354 = vadd.f32 %v336, 1.0
  %v355 = vadd.f32 %v338, 1.0
  %v356 = vadd.f32 %v340, 1.0
  %v357 = vrcp.pop %v341
  %v358 = vmul.f32 1.0, %v357
  %v359 = vrcp.pop %v342
  %v360 = vmul.f32 1.0, %v359
  %v361 = vrcp.pop %v343
  %v362 = vmul.f32 1.0, %v361
  %v363 = vrcp.pop %v344
  %v364 = vmul.f32 1.0, %v363
  %v365 = vrcp.pop %v345
  %v366 = vmul.f32 1.0, %v365
  %v367 = vrcp.pop %v346
  %v368 = vmul.f32 1.0, %v367
  %v369 = vrcp.pop %v347
  %v370 = vmul.f32 1.0, %v369
  %v371 = vrcp.pop %v348
  %v372 = vmul.f32 1.0, %v371
  %v373 = vrcp.pop %v349
  %v374 = vmul.f32 1.0, %v373
  %v375 = vrcp.pop %v350
  %v376 = vmul.f32 1.0, %v375
  %v377 = vrcp.pop %v351
  %v378 = vmul.f32 1.0, %v377
  %v379 = vrcp.pop %v352
  %v380 = vmul.f32 1.0, %v379
  %v381 = vrcp.pop %v353
  %v382 = vmul.f32 1.0, %v381
  %v383 = vrcp.pop %v354
  %v384 = vmul.f32 1.0, %v383
  %v385 = vrcp.pop %v355
  %v386 = vmul.f32 1.0, %v385
  %v387 = vrcp.pop %v356
  %v388 = vmul.f32 1.0, %v387
  %v389 = vmul.f32 %v118, %v358
  %v390 = vmul.f32 %v121, %v360
  %v391 = vmul.f32 %v126, %v362
  %v392 = vmul.f32 %v129, %v364
  %v393 = vmul.f32 %v134, %v366
  %v394 = vmul.f32 %v137, %v368
  %v395 = vmul.f32 %v142, %v370
  %v396 = vmul.f32 %v145, %v372
  %v397 = vmul.f32 %v150, %v374
  %v398 = vmul.f32 %v153, %v376
  %v399 = vmul.f32 %v158, %v378
  %v400 = vmul.f32 %v161, %v380
  %v401 = vmul.f32 %v166, %v382
  %v402 = vmul.f32 %v169, %v384
  %v403 = vmul.f32 %v174, %v386
  %v404 = vmul.f32 %v177, %v388
  %v405 = vmul.f32 %v389, %v231
  %v406 = vmul.f32 %v390, %v234
  %v407 = vmul.f32 %v391, %v239
  %v408 = vmul.f32 %v392, %v242
  %v409 = vmul.f32 %v393, %v247
  %v410 = vmul.f32 %v394, %v250
  %v411 = vmul.f32 %v395, %v255
  %v412 = vmul.f32 %v396, %v258
  %v413 = vmul.f32 %v397, %v263
  %v414 = vmul.f32 %v398, %v266
  %v415 = vmul.f32 %v399, %v271
  %v416 = vmul.f32 %v400, %v274
  %v417 = vmul.f32 %v401, %v279
  %v418 = vmul.f32 %v402, %v282
  %v419 = vmul.f32 %v403, %v287
  %v420 = vmul.f32 %v404, %v290
  %v421 = vpack.c.bf16 %v406, %v405
  %v422 = vpack.c.bf16 %v408, %v407
  %v423 = vpack.c.bf16 %v410, %v409
  %v424 = vpack.c.bf16 %v412, %v411
  %v425 = vpack.c.bf16 %v414, %v413
  %v426 = vpack.c.bf16 %v416, %v415
  %v427 = vpack.c.bf16 %v418, %v417
  %v428 = vpack.c.bf16 %v420, %v419
  %v429 = vld [vmem:[%s3] sm:$0xf]
  %v430 = vld [vmem:[%s3 + $0x4] sm:$0xf]
  %v431 = vld [vmem:[%s3 + $0x8] sm:$0xf]
  %v432 = vld [vmem:[%s3 + $0xc] sm:$0xf]
  %v433 = vld [vmem:[%s3 + $0x10] sm:$0xf]
  %v434 = vld [vmem:[%s3 + $0x14] sm:$0xf]
  %v435 = vld [vmem:[%s3 + $0x18] sm:$0xf]
  %v436 = vld [vmem:[%s3 + $0x1c] sm:$0xf]
  %v445 = vunpack.c.l.b16 %v429
  %v446 = vunpack.c.l.b16 %v430
  %v447 = vunpack.c.l.b16 %v431
  %v448 = vunpack.c.l.b16 %v432
  %v449 = vunpack.c.l.b16 %v433
  %v450 = vunpack.c.l.b16 %v434
  %v451 = vunpack.c.l.b16 %v435
  %v452 = vunpack.c.l.b16 %v436
  %v453 = vpack.c.b16 %v446, %v445
  %v454 = vpack.c.b16 %v448, %v447
  %v455 = vpack.c.b16 %v450, %v449
  %v456 = vpack.c.b16 %v452, %v451
  %vm461 = vcmask 523264
  %v463 = vsel %vm461, %v421, 0
  %v466 = vsel %vm461, %v422, 0
  %v469 = vsel %vm461, %v423, 0
  %v472 = vsel %vm461, %v424, 0
  %v475 = vsel %vm461, %v425, 0
  %v478 = vsel %vm461, %v426, 0
  %v481 = vsel %vm461, %v427, 0
  %v484 = vsel %vm461, %v428, 0
  %486 = vmatprep.subr.bf16.mxu0 0
  %487 = vmatpush1.bf16.msra.mxu0 0
  %488 = vmatprep.subr.bf16.mxu0 0
  %489 = vmatpush1.bf16.msra.mxu0 0
  %490 = vmatprep.subr.bf16.mxu0 0
  %491 = vmatpush1.bf16.msra.mxu0 0
  %492 = vmatprep.subr.bf16.mxu0 0
  %493 = vmatpush1.bf16.msra.mxu0 0
  %494 = vmatprep.subr.bf16.mxu0 0
  %495 = vmatpush1.bf16.msra.mxu0 %v456
  %496 = vmatprep.subr.bf16.mxu0 0
  %497 = vmatpush1.bf16.msra.mxu0 %v455
  %498 = vmatprep.subr.bf16.mxu0 0
  %499 = vmatpush1.bf16.msra.mxu0 %v454
  %500 = vmatprep.subr.bf16.mxu0 0
  %501 = vmatpush1.bf16.msra.mxu0 %v453
  %502 = vmatprep.subr.bf16.mxu0 0
  %503 = vmatpush2.bf16.msra.mxu0 0
  %504 = vmatprep.subr.bf16.mxu0 0
  %505 = vmatpush2.bf16.msra.mxu0 0
  %506 = vmatprep.subr.bf16.mxu0 0
  %507 = vmatpush2.bf16.msra.mxu0 0
  %508 = vmatprep.subr.bf16.mxu0 0
  %509 = vmatpush2.bf16.msra.mxu0 0
  %510 = vmatprep.subr.bf16.mxu0 0
  %511 = vmatpush2.bf16.msra.mxu0 0
  %512 = vmatprep.subr.bf16.mxu0 0
  %513 = vmatpush2.bf16.msra.mxu0 0
  %514 = vmatprep.subr.bf16.mxu0 0
  %515 = vmatpush2.bf16.msra.mxu0 0
  %516 = vmatprep.subr.bf16.mxu0 0
  %517 = vmatpush2.bf16.msra.mxu0 0
  %518 = vmatprep.mubr.bf16.mxu0 0
  %519 = vmatmul.mubr.bf16.gmra.mxu0 %v463
  %v520 = vpop.f32.mrf.mxu0
  %v521 = vadd.f32 0.0, %v520
  %v522 = vpop.f32.mrf.mxu0
  %v523 = vpop.f32.mrf.mxu0
  %v524 = vadd.f32 0.0, %v523
  %v525 = vpop.f32.mrf.mxu0
  %526 = vmatprep.mubr.bf16.mxu0 0
  %527 = vmatmul.mubr.bf16.gmra.mxu0 %v466
  %v528 = vpop.f32.mrf.mxu0
  %v529 = vadd.f32 0.0, %v528
  %v530 = vpop.f32.mrf.mxu0
  %v531 = vpop.f32.mrf.mxu0
  %v532 = vadd.f32 0.0, %v531
  %v533 = vpop.f32.mrf.mxu0
  %534 = vmatprep.mubr.bf16.mxu0 0
  %535 = vmatmul.mubr.bf16.gmra.mxu0 %v469
  %v536 = vpop.f32.mrf.mxu0
  %v537 = vadd.f32 0.0, %v536
  %v538 = vpop.f32.mrf.mxu0
  %v539 = vpop.f32.mrf.mxu0
  %v540 = vadd.f32 0.0, %v539
  %v541 = vpop.f32.mrf.mxu0
  %542 = vmatprep.mubr.bf16.mxu0 0
  %543 = vmatmul.mubr.bf16.gmra.mxu0 %v472
  %v544 = vpop.f32.mrf.mxu0
  %v545 = vadd.f32 0.0, %v544
  %v546 = vpop.f32.mrf.mxu0
  %v547 = vpop.f32.mrf.mxu0
  %v548 = vadd.f32 0.0, %v547
  %v549 = vpop.f32.mrf.mxu0
  %550 = vmatprep.mubr.bf16.mxu0 0
  %551 = vmatmul.mubr.bf16.gmra.mxu0 %v475
  %v552 = vpop.f32.mrf.mxu0
  %v553 = vadd.f32 0.0, %v552
  %v554 = vpop.f32.mrf.mxu0
  %v555 = vpop.f32.mrf.mxu0
  %v556 = vadd.f32 0.0, %v555
  %v557 = vpop.f32.mrf.mxu0
  %558 = vmatprep.mubr.bf16.mxu0 0
  %559 = vmatmul.mubr.bf16.gmra.mxu0 %v478
  %v560 = vpop.f32.mrf.mxu0
  %v561 = vadd.f32 0.0, %v560
  %v562 = vpop.f32.mrf.mxu0
  %v563 = vpop.f32.mrf.mxu0
  %v564 = vadd.f32 0.0, %v563
  %v565 = vpop.f32.mrf.mxu0
  %566 = vmatprep.mubr.bf16.mxu0 0
  %567 = vmatmul.mubr.bf16.gmra.mxu0 %v481
  %v568 = vpop.f32.mrf.mxu0
  %v569 = vadd.f32 0.0, %v568
  %v570 = vpop.f32.mrf.mxu0
  %v571 = vpop.f32.mrf.mxu0
  %v572 = vadd.f32 0.0, %v571
  %v573 = vpop.f32.mrf.mxu0
  %574 = vmatprep.mubr.bf16.mxu0 0
  %575 = vmatmul.mubr.bf16.gmra.mxu0 %v484
  %v576 = vpop.f32.mrf.mxu0
  %v577 = vadd.f32 0.0, %v576
  %v578 = vpop.f32.mrf.mxu0
  %v579 = vpop.f32.mrf.mxu0
  %v580 = vadd.f32 0.0, %v579
  %v581 = vpop.f32.mrf.mxu0
  %582 = vdwg.mxu0
  %583 = vst.msk [vmem:[%s4] sm:$0xff] %vm58, %v521
  %584 = vst.msk [vmem:[%s4 + $0x8] sm:$0xff] %vm58, %v524
  %585 = vst.msk [vmem:[%s4 + $0x10] sm:$0xff] %vm58, %v529
  %586 = vst.msk [vmem:[%s4 + $0x18] sm:$0xff] %vm58, %v532
  %587 = vst.msk [vmem:[%s4 + $0x20] sm:$0xff] %vm58, %v537
  %588 = vst.msk [vmem:[%s4 + $0x28] sm:$0xff] %vm58, %v540
  %589 = vst.msk [vmem:[%s4 + $0x30] sm:$0xff] %vm58, %v545
  %590 = vst.msk [vmem:[%s4 + $0x38] sm:$0xff] %vm58, %v548
  %591 = vst.msk [vmem:[%s4 + $0x40] sm:$0xff] %vm58, %v553
  %592 = vst.msk [vmem:[%s4 + $0x48] sm:$0xff] %vm58, %v556
  %593 = vst.msk [vmem:[%s4 + $0x50] sm:$0xff] %vm58, %v561
  %594 = vst.msk [vmem:[%s4 + $0x58] sm:$0xff] %vm58, %v564
  %595 = vst.msk [vmem:[%s4 + $0x60] sm:$0xff] %vm58, %v569
  %596 = vst.msk [vmem:[%s4 + $0x68] sm:$0xff] %vm58, %v572
  %597 = vst.msk [vmem:[%s4 + $0x70] sm:$0xff] %vm58, %v577
  %598 = vst.msk [vmem:[%s4 + $0x78] sm:$0xff] %vm58, %v580
  // Predicated region
  $region18: #{tpu_custom_call.1} parent=0 // pred_check
    _
  $region19: #{tpu_custom_call.1} parent=0 // pred_check_branch
    %600 = sbr.rel (0) target = $region21
  $region20: #{tpu_custom_call.1} parent=0 // pred_region
    _
  $region21: #{tpu_custom_call.1} parent=0 // pred_fallthru
    _
  // Predicated region
  $region22: #{tpu_custom_call.1} parent=0 // pred_check
    _
  $region23: #{tpu_custom_call.1} parent=0 // pred_check_branch
    %602 = sbr.rel (0) target = $region25
  $region24: #{tpu_custom_call.1} parent=0 // pred_region
    _
  $region25: #{tpu_custom_call.1} parent=0 // pred_fallthru
    _

// kernel: tpu_custom_call.1
$region0: #{tpu_custom_call.1}
  #allocation0 [shape = 'u32[]', space=smem, size = 0x4, offset = 0x4, fixed_abs, tag = 'smem constant byte address 0x4 - core index']
  #allocation1 [shape = 'u32[144,128]{1,0:T(1,128)}', space=vmem, size = 0x12000, scoped, tag = 'internal scratch']
  %s0 = inlined_call_operand.vmem [shape: f32[128,32], index: 0, kind: input, shape index: {}]
  %s1 = inlined_call_operand.vmem [shape: bf16[32,64], index: 1, kind: input, shape index: {}]
  %s2 = inlined_call_operand.vmem [shape: bf16[32,64], index: 2, kind: input, shape index: {}]
  %s3 = inlined_call_operand.vmem [shape: bf16[64,32], index: 3, kind: input, shape index: {}]
  %s4 = inlined_call_operand.vmem [shape: f32[128,32], index: 4, kind: output, shape index: {}]
  %s5 = sld [smem:[#allocation0]]
  $region26: #{tpu_custom_call.1} parent=0
    _
  %s7 = ssub.s32 1, %s5
  %s8 = scalar_select 0, %s7, %s5
  // Predicated region
  $region2: #{tpu_custom_call.1} parent=0 // pred_check
    _
  $region3: #{tpu_custom_call.1} parent=0 // pred_check_branch
    %10 = sbr.rel (0) target = $region5
  $region4: #{tpu_custom_call.1} parent=0 // pred_region
    _
  $region5: #{tpu_custom_call.1} parent=0 // pred_fallthru
    _
  // Predicated region
  $region6: #{tpu_custom_call.1} parent=0 // pred_check
    _
  $region7: #{tpu_custom_call.1} parent=0 // pred_check_branch
    %12 = sbr.rel (0) target = $region9
  $region8: #{tpu_custom_call.1} parent=0 // pred_region
    _
  $region9: #{tpu_custom_call.1} parent=0 // pred_fallthru
    _
  // Predicated region
  $region10: #{tpu_custom_call.1} parent=0 // pred_check
    _
  $region11: #{tpu_custom_call.1} parent=0 // pred_check_branch
    %14 = sbr.rel (0) target = $region13
  $region12: #{tpu_custom_call.1} parent=0 // pred_region
    _
  $region13: #{tpu_custom_call.1} parent=0 // pred_fallthru
    _
  // Predicated region
  $region14: #{tpu_custom_call.1} parent=0 // pred_check
    _
  $region15: #{tpu_custom_call.1} parent=0 // pred_check_branch
    %16 = sbr.rel (0) target = $region17
  $region16: #{tpu_custom_call.1} parent=0 // pred_region
    _
  $region17: #{tpu_custom_call.1} parent=0 // pred_fallthru
    _
  %v18 = vld [vmem:[%s0] sm:$0xff]
  %v19 = vld [vmem:[%s0 + $0x8] sm:$0xff]
  %v20 = vld [vmem:[%s0 + $0x10] sm:$0xff]
  %v21 = vld [vmem:[%s0 + $0x18] sm:$0xff]
  %v22 = vld [vmem:[%s0 + $0x20] sm:$0xff]
  %v23 = vld [vmem:[%s0 + $0x28] sm:$0xff]
  %v24 = vld [vmem:[%s0 + $0x30] sm:$0xff]
  %v25 = vld [vmem:[%s0 + $0x38] sm:$0xff]
  %v26 = vld [vmem:[%s0 + $0x40] sm:$0xff]
  %v27 = vld [vmem:[%s0 + $0x48] sm:$0xff]
  %v28 = vld [vmem:[%s0 + $0x50] sm:$0xff]
  %v29 = vld [vmem:[%s0 + $0x58] sm:$0xff]
  %v30 = vld [vmem:[%s0 + $0x60] sm:$0xff]
  %v31 = vld [vmem:[%s0 + $0x68] sm:$0xff]
  %v32 = vld [vmem:[%s0 + $0x70] sm:$0xff]
  %v33 = vld [vmem:[%s0 + $0x78] sm:$0xff]
  %v34 = vpack.c.bf16 %v19, %v18
  %v35 = vpack.c.bf16 %v21, %v20
  %v36 = vpack.c.bf16 %v23, %v22
  %v37 = vpack.c.bf16 %v25, %v24
  %v38 = vpack.c.bf16 %v27, %v26
  %v39 = vpack.c.bf16 %v29, %v28
  %v40 = vpack.c.bf16 %v31, %v30
  %v41 = vpack.c.bf16 %v33, %v32
  %v42 = vld [vmem:[%s1] sm:$0xf]
  %v43 = vld [vmem:[%s1 + $0x4] sm:$0xf]
  %v44 = vld [vmem:[%s1 + $0x8] sm:$0xf]
  %v45 = vld [vmem:[%s1 + $0xc] sm:$0xf]
  %v50 = vunpack.c.l.b16 %v42
  %v51 = vunpack.c.l.b16 %v43
  %v52 = vunpack.c.l.b16 %v44
  %v53 = vunpack.c.l.b16 %v45
  %v54 = vpack.c.b16 %v51, %v50
  %v55 = vpack.c.b16 %v53, %v52
  %vm58 = vcmask 261120
  %v60 = vsel %vm58, %v34, 0
  %v63 = vsel %vm58, %v35, 0
  %v66 = vsel %vm58, %v36, 0
  %v69 = vsel %vm58, %v37, 0
  %v72 = vsel %vm58, %v38, 0
  %v75 = vsel %vm58, %v39, 0
  %v78 = vsel %vm58, %v40, 0
  %v81 = vsel %vm58, %v41, 0
  %83 = vmatprep.subr.bf16.mxu0 0
  %84 = vmatpush1.bf16.msra.mxu0 0
  %85 = vmatprep.subr.bf16.mxu0 0
  %86 = vmatpush1.bf16.msra.mxu0 0
  %87 = vmatprep.subr.bf16.mxu0 0
  %88 = vmatpush1.bf16.msra.mxu0 0
  %89 = vmatprep.subr.bf16.mxu0 0
  %90 = vmatpush1.bf16.msra.mxu0 0
  %91 = vmatprep.subr.bf16.mxu0 0
  %92 = vmatpush1.bf16.msra.mxu0 0
  %93 = vmatprep.subr.bf16.mxu0 0
  %94 = vmatpush1.bf16.msra.mxu0 0
  %95 = vmatprep.subr.bf16.mxu0 0
  %96 = vmatpush1.bf16.msra.mxu0 %v55
  %97 = vmatprep.subr.bf16.mxu0 0
  %98 = vmatpush1.bf16.msra.mxu0 %v54
  %99 = vmatprep.subr.bf16.mxu0 0
  %100 = vmatpush2.bf16.msra.mxu0 0
  %101 = vmatprep.subr.bf16.mxu0 0
  %102 = vmatpush2.bf16.msra.mxu0 0
  %103 = vmatprep.subr.bf16.mxu0 0
  %104 = vmatpush2.bf16.msra.mxu0 0
  %105 = vmatprep.subr.bf16.mxu0 0
  %106 = vmatpush2.bf16.msra.mxu0 0
  %107 = vmatprep.subr.bf16.mxu0 0
  %108 = vmatpush2.bf16.msra.mxu0 0
  %109 = vmatprep.subr.bf16.mxu0 0
  %110 = vmatpush2.bf16.msra.mxu0 0
  %111 = vmatprep.subr.bf16.mxu0 0
  %112 = vmatpush2.bf16.msra.mxu0 0
  %113 = vmatprep.subr.bf16.mxu0 0
  %114 = vmatpush2.bf16.msra.mxu0 0
  %115 = vmatprep.mubr.bf16.mxu0 0
  %116 = vmatmul.mubr.bf16.gmra.mxu0 %v60
  %v117 = vpop.f32.mrf.mxu0
  %v118 = vadd.f32 0.0, %v117
  %v119 = vpop.f32.mrf.mxu0
  %v120 = vpop.f32.mrf.mxu0
  %v121 = vadd.f32 0.0, %v120
  %v122 = vpop.f32.mrf.mxu0
  %123 = vmatprep.mubr.bf16.mxu0 0
  %124 = vmatmul.mubr.bf16.gmra.mxu0 %v63
  %v125 = vpop.f32.mrf.mxu0
  %v126 = vadd.f32 0.0, %v125
  %v127 = vpop.f32.mrf.mxu0
  %v128 = vpop.f32.mrf.mxu0
  %v129 = vadd.f32 0.0, %v128
  %v130 = vpop.f32.mrf.mxu0
  %131 = vmatprep.mubr.bf16.mxu0 0
  %132 = vmatmul.mubr.bf16.gmra.mxu0 %v66
  %v133 = vpop.f32.mrf.mxu0
  %v134 = vadd.f32 0.0, %v133
  %v135 = vpop.f32.mrf.mxu0
  %v136 = vpop.f32.mrf.mxu0
  %v137 = vadd.f32 0.0, %v136
  %v138 = vpop.f32.mrf.mxu0
  %139 = vmatprep.mubr.bf16.mxu0 0
  %140 = vmatmul.mubr.bf16.gmra.mxu0 %v69
  %v141 = vpop.f32.mrf.mxu0
  %v142 = vadd.f32 0.0, %v141
  %v143 = vpop.f32.mrf.mxu0
  %v144 = vpop.f32.mrf.mxu0
  %v145 = vadd.f32 0.0, %v144
  %v146 = vpop.f32.mrf.mxu0
  %147 = vmatprep.mubr.bf16.mxu0 0
  %148 = vmatmul.mubr.bf16.gmra.mxu0 %v72
  %v149 = vpop.f32.mrf.mxu0
  %v150 = vadd.f32 0.0, %v149
  %v151 = vpop.f32.mrf.mxu0
  %v152 = vpop.f32.mrf.mxu0
  %v153 = vadd.f32 0.0, %v152
  %v154 = vpop.f32.mrf.mxu0
  %155 = vmatprep.mubr.bf16.mxu0 0
  %156 = vmatmul.mubr.bf16.gmra.mxu0 %v75
  %v157 = vpop.f32.mrf.mxu0
  %v158 = vadd.f32 0.0, %v157
  %v159 = vpop.f32.mrf.mxu0
  %v160 = vpop.f32.mrf.mxu0
  %v161 = vadd.f32 0.0, %v160
  %v162 = vpop.f32.mrf.mxu0
  %163 = vmatprep.mubr.bf16.mxu0 0
  %164 = vmatmul.mubr.bf16.gmra.mxu0 %v78
  %v165 = vpop.f32.mrf.mxu0
  %v166 = vadd.f32 0.0, %v165
  %v167 = vpop.f32.mrf.mxu0
  %v168 = vpop.f32.mrf.mxu0
  %v169 = vadd.f32 0.0, %v168
  %v170 = vpop.f32.mrf.mxu0
  %171 = vmatprep.mubr.bf16.mxu0 0
  %172 = vmatmul.mubr.bf16.gmra.mxu0 %v81
  %v173 = vpop.f32.mrf.mxu0
  %v174 = vadd.f32 0.0, %v173
  %v175 = vpop.f32.mrf.mxu0
  %v176 = vpop.f32.mrf.mxu0
  %v177 = vadd.f32 0.0, %v176
  %v178 = vpop.f32.mrf.mxu0
  %179 = vdwg.mxu0
  %v180 = vld [vmem:[%s2] sm:$0xf]
  %v181 = vld [vmem:[%s2 + $0x4] sm:$0xf]
  %v182 = vld [vmem:[%s2 + $0x8] sm:$0xf]
  %v183 = vld [vmem:[%s2 + $0xc] sm:$0xf]
  %v188 = vunpack.c.l.b16 %v180
  %v189 = vunpack.c.l.b16 %v181
  %v190 = vunpack.c.l.b16 %v182
  %v191 = vunpack.c.l.b16 %v183
  %v192 = vpack.c.b16 %v189, %v188
  %v193 = vpack.c.b16 %v191, %v190
  %196 = vmatprep.subr.bf16.mxu0 0
  %197 = vmatpush1.bf16.msra.mxu0 0
  %198 = vmatprep.subr.bf16.mxu0 0
  %199 = vmatpush1.bf16.msra.mxu0 0
  %200 = vmatprep.subr.bf16.mxu0 0
  %201 = vmatpush1.bf16.msra.mxu0 0
  %202 = vmatprep.subr.bf16.mxu0 0
  %203 = vmatpush1.bf16.msra.mxu0 0
  %204 = vmatprep.subr.bf16.mxu0 0
  %205 = vmatpush1.bf16.msra.mxu0 0
  %206 = vmatprep.subr.bf16.mxu0 0
  %207 = vmatpush1.bf16.msra.mxu0 0
  %208 = vmatprep.subr.bf16.mxu0 0
  %209 = vmatpush1.bf16.msra.mxu0 %v193
  %210 = vmatprep.subr.bf16.mxu0 0
  %211 = vmatpush1.bf16.msra.mxu0 %v192
  %212 = vmatprep.subr.bf16.mxu0 0
  %213 = vmatpush2.bf16.msra.mxu0 0
  %214 = vmatprep.subr.bf16.mxu0 0
  %215 = vmatpush2.bf16.msra.mxu0 0
  %216 = vmatprep.subr.bf16.mxu0 0
  %217 = vmatpush2.bf16.msra.mxu0 0
  %218 = vmatprep.subr.bf16.mxu0 0
  %219 = vmatpush2.bf16.msra.mxu0 0
  %220 = vmatprep.subr.bf16.mxu0 0
  %221 = vmatpush2.bf16.msra.mxu0 0
  %222 = vmatprep.subr.bf16.mxu0 0
  %223 = vmatpush2.bf16.msra.mxu0 0
  %224 = vmatprep.subr.bf16.mxu0 0
  %225 = vmatpush2.bf16.msra.mxu0 0
  %226 = vmatprep.subr.bf16.mxu0 0
  %227 = vmatpush2.bf16.msra.mxu0 0
  %228 = vmatprep.mubr.bf16.mxu0 0
  %229 = vmatmul.mubr.bf16.gmra.mxu0 %v60
  %v230 = vpop.f32.mrf.mxu0
  %v231 = vadd.f32 0.0, %v230
  %v232 = vpop.f32.mrf.mxu0
  %v233 = vpop.f32.mrf.mxu0
  %v234 = vadd.f32 0.0, %v233
  %v235 = vpop.f32.mrf.mxu0
  %236 = vmatprep.mubr.bf16.mxu0 0
  %237 = vmatmul.mubr.bf16.gmra.mxu0 %v63
  %v238 = vpop.f32.mrf.mxu0
  %v239 = vadd.f32 0.0, %v238
  %v240 = vpop.f32.mrf.mxu0
  %v241 = vpop.f32.mrf.mxu0
  %v242 = vadd.f32 0.0, %v241
  %v243 = vpop.f32.mrf.mxu0
  %244 = vmatprep.mubr.bf16.mxu0 0
  %245 = vmatmul.mubr.bf16.gmra.mxu0 %v66
  %v246 = vpop.f32.mrf.mxu0
  %v247 = vadd.f32 0.0, %v246
  %v248 = vpop.f32.mrf.mxu0
  %v249 = vpop.f32.mrf.mxu0
  %v250 = vadd.f32 0.0, %v249
  %v251 = vpop.f32.mrf.mxu0
  %252 = vmatprep.mubr.bf16.mxu0 0
  %253 = vmatmul.mubr.bf16.gmra.mxu0 %v69
  %v254 = vpop.f32.mrf.mxu0
  %v255 = vadd.f32 0.0, %v254
  %v256 = vpop.f32.mrf.mxu0
  %v257 = vpop.f32.mrf.mxu0
  %v258 = vadd.f32 0.0, %v257
  %v259 = vpop.f32.mrf.mxu0
  %260 = vmatprep.mubr.bf16.mxu0 0
  %261 = vmatmul.mubr.bf16.gmra.mxu0 %v72
  %v262 = vpop.f32.mrf.mxu0
  %v263 = vadd.f32 0.0, %v262
  %v264 = vpop.f32.mrf.mxu0
  %v265 = vpop.f32.mrf.mxu0
  %v266 = vadd.f32 0.0, %v265
  %v267 = vpop.f32.mrf.mxu0
  %268 = vmatprep.mubr.bf16.mxu0 0
  %269 = vmatmul.mubr.bf16.gmra.mxu0 %v75
  %v270 = vpop.f32.mrf.mxu0
  %v271 = vadd.f32 0.0, %v270
  %v272 = vpop.f32.mrf.mxu0
  %v273 = vpop.f32.mrf.mxu0
  %v274 = vadd.f32 0.0, %v273
  %v275 = vpop.f32.mrf.mxu0
  %276 = vmatprep.mubr.bf16.mxu0 0
  %277 = vmatmul.mubr.bf16.gmra.mxu0 %v78
  %v278 = vpop.f32.mrf.mxu0
  %v279 = vadd.f32 0.0, %v278
  %v280 = vpop.f32.mrf.mxu0
  %v281 = vpop.f32.mrf.mxu0
  %v282 = vadd.f32 0.0, %v281
  %v283 = vpop.f32.mrf.mxu0
  %284 = vmatprep.mubr.bf16.mxu0 0
  %285 = vmatmul.mubr.bf16.gmra.mxu0 %v81
  %v286 = vpop.f32.mrf.mxu0
  %v287 = vadd.f32 0.0, %v286
  %v288 = vpop.f32.mrf.mxu0
  %v289 = vpop.f32.mrf.mxu0
  %v290 = vadd.f32 0.0, %v289
  %v291 = vpop.f32.mrf.mxu0
  %292 = vdwg.mxu0
  %v293 = vxor.u32 %v118, 2147483648
  %v294 = vxor.u32 %v121, 2147483648
  %v295 = vxor.u32 %v126, 2147483648
  %v296 = vxor.u32 %v129, 2147483648
  %v297 = vxor.u32 %v134, 2147483648
  %v298 = vxor.u32 %v137, 2147483648
  %v299 = vxor.u32 %v142, 2147483648
  %v300 = vxor.u32 %v145, 2147483648
  %v301 = vxor.u32 %v150, 2147483648
  %v302 = vxor.u32 %v153, 2147483648
  %v303 = vxor.u32 %v158, 2147483648
  %v304 = vxor.u32 %v161, 2147483648
  %v305 = vxor.u32 %v166, 2147483648
  %v306 = vxor.u32 %v169, 2147483648
  %v307 = vxor.u32 %v174, 2147483648
  %v308 = vxor.u32 %v177, 2147483648
  %v309 = vmul.f32 %v293, 1.442695
  %v310 = vpow.pop %v309
  %v311 = vmul.f32 %v294, 1.442695
  %v312 = vpow.pop %v311
  %v313 = vmul.f32 %v295, 1.442695
  %v314 = vpow.pop %v313
  %v315 = vmul.f32 %v296, 1.442695
  %v316 = vpow.pop %v315
  %v317 = vmul.f32 %v297, 1.442695
  %v318 = vpow.pop %v317
  %v319 = vmul.f32 %v298, 1.442695
  %v320 = vpow.pop %v319
  %v321 = vmul.f32 %v299, 1.442695
  %v322 = vpow.pop %v321
  %v323 = vmul.f32 %v300, 1.442695
  %v324 = vpow.pop %v323
  %v325 = vmul.f32 %v301, 1.442695
  %v326 = vpow.pop %v325
  %v327 = vmul.f32 %v302, 1.442695
  %v328 = vpow.pop %v327
  %v329 = vmul.f32 %v303, 1.442695
  %v330 = vpow.pop %v329
  %v331 = vmul.f32 %v304, 1.442695
  %v332 = vpow.pop %v331
  %v333 = vmul.f32 %v305, 1.442695
  %v334 = vpow.pop %v333
  %v335 = vmul.f32 %v306, 1.442695
  %v336 = vpow.pop %v335
  %v337 = vmul.f32 %v307, 1.442695
  %v338 = vpow.pop %v337
  %v339 = vmul.f32 %v308, 1.442695
  %v340 = vpow.pop %v339
  %v341 = vadd.f32 %v310, 1.0
  %v342 = vadd.f32 %v312, 1.0
  %v343 = vadd.f32 %v314, 1.0
  %v344 = vadd.f32 %v316, 1.0
  %v345 = vadd.f32 %v318, 1.0
  %v346 = vadd.f32 %v320, 1.0
  %v347 = vadd.f32 %v322, 1.0
  %v348 = vadd.f32 %v324, 1.0
  %v349 = vadd.f32 %v326, 1.0
  %v350 = vadd.f32 %v328, 1.0
  %v351 = vadd.f32 %v330, 1.0
  %v352 = vadd.f32 %v332, 1.0
  %v353 = vadd.f32 %v334, 1.0
  %v354 = vadd.f32 %v336, 1.0
  %v355 = vadd.f32 %v338, 1.0
  %v356 = vadd.f32 %v340, 1.0
  %v357 = vrcp.pop %v341
  %v358 = vmul.f32 1.0, %v357
  %v359 = vrcp.pop %v342
  %v360 = vmul.f32 1.0, %v359
  %v361 = vrcp.pop %v343
  %v362 = vmul.f32 1.0, %v361
  %v363 = vrcp.pop %v344
  %v364 = vmul.f32 1.0, %v363
  %v365 = vrcp.pop %v345
  %v366 = vmul.f32 1.0, %v365
  %v367 = vrcp.pop %v346
  %v368 = vmul.f32 1.0, %v367
  %v369 = vrcp.pop %v347
  %v370 = vmul.f32 1.0, %v369
  %v371 = vrcp.pop %v348
  %v372 = vmul.f32 1.0, %v371
  %v373 = vrcp.pop %v349
  %v374 = vmul.f32 1.0, %v373
  %v375 = vrcp.pop %v350
  %v376 = vmul.f32 1.0, %v375
  %v377 = vrcp.pop %v351
  %v378 = vmul.f32 1.0, %v377
  %v379 = vrcp.pop %v352
  %v380 = vmul.f32 1.0, %v379
  %v381 = vrcp.pop %v353
  %v382 = vmul.f32 1.0, %v381
  %v383 = vrcp.pop %v354
  %v384 = vmul.f32 1.0, %v383
  %v385 = vrcp.pop %v355
  %v386 = vmul.f32 1.0, %v385
  %v387 = vrcp.pop %v356
  %v388 = vmul.f32 1.0, %v387
  %v389 = vmul.f32 %v118, %v358
  %v390 = vmul.f32 %v121, %v360
  %v391 = vmul.f32 %v126, %v362
  %v392 = vmul.f32 %v129, %v364
  %v393 = vmul.f32 %v134, %v366
  %v394 = vmul.f32 %v137, %v368
  %v395 = vmul.f32 %v142, %v370
  %v396 = vmul.f32 %v145, %v372
  %v397 = vmul.f32 %v150, %v374
  %v398 = vmul.f32 %v153, %v376
  %v399 = vmul.f32 %v158, %v378
  %v400 = vmul.f32 %v161, %v380
  %v401 = vmul.f32 %v166, %v382
  %v402 = vmul.f32 %v169, %v384
  %v403 = vmul.f32 %v174, %v386
  %v404 = vmul.f32 %v177, %v388
  %v405 = vmul.f32 %v389, %v231
  %v406 = vmul.f32 %v390, %v234
  %v407 = vmul.f32 %v391, %v239
  %v408 = vmul.f32 %v392, %v242
  %v409 = vmul.f32 %v393, %v247
  %v410 = vmul.f32 %v394, %v250
  %v411 = vmul.f32 %v395, %v255
  %v412 = vmul.f32 %v396, %v258
  %v413 = vmul.f32 %v397, %v263
  %v414 = vmul.f32 %v398, %v266
  %v415 = vmul.f32 %v399, %v271
  %v416 = vmul.f32 %v400, %v274
  %v417 = vmul.f32 %v401, %v279
  %v418 = vmul.f32 %v402, %v282
  %v419 = vmul.f32 %v403, %v287
  %v420 = vmul.f32 %v404, %v290
  %v421 = vpack.c.bf16 %v406, %v405
  %v422 = vpack.c.bf16 %v408, %v407
  %v423 = vpack.c.bf16 %v410, %v409
  %v424 = vpack.c.bf16 %v412, %v411
  %v425 = vpack.c.bf16 %v414, %v413
  %v426 = vpack.c.bf16 %v416, %v415
  %v427 = vpack.c.bf16 %v418, %v417
  %v428 = vpack.c.bf16 %v420, %v419
  %v429 = vld [vmem:[%s3] sm:$0xf]
  %v430 = vld [vmem:[%s3 + $0x4] sm:$0xf]
  %v431 = vld [vmem:[%s3 + $0x8] sm:$0xf]
  %v432 = vld [vmem:[%s3 + $0xc] sm:$0xf]
  %v433 = vld [vmem:[%s3 + $0x10] sm:$0xf]
  %v434 = vld [vmem:[%s3 + $0x14] sm:$0xf]
  %v435 = vld [vmem:[%s3 + $0x18] sm:$0xf]
  %v436 = vld [vmem:[%s3 + $0x1c] sm:$0xf]
  %v445 = vunpack.c.l.b16 %v429
  %v446 = vunpack.c.l.b16 %v430
  %v447 = vunpack.c.l.b16 %v431
  %v448 = vunpack.c.l.b16 %v432
  %v449 = vunpack.c.l.b16 %v433
  %v450 = vunpack.c.l.b16 %v434
  %v451 = vunpack.c.l.b16 %v435
  %v452 = vunpack.c.l.b16 %v436
  %v453 = vpack.c.b16 %v446, %v445
  %v454 = vpack.c.b16 %v448, %v447
  %v455 = vpack.c.b16 %v450, %v449
  %v456 = vpack.c.b16 %v452, %v451
  %vm461 = vcmask 523264
  %v463 = vsel %vm461, %v421, 0
  %v466 = vsel %vm461, %v422, 0
  %v469 = vsel %vm461, %v423, 0
  %v472 = vsel %vm461, %v424, 0
  %v475 = vsel %vm461, %v425, 0
  %v478 = vsel %vm461, %v426, 0
  %v481 = vsel %vm461, %v427, 0
  %v484 = vsel %vm461, %v428, 0
  %486 = vmatprep.subr.bf16.mxu0 0
  %487 = vmatpush1.bf16.msra.mxu0 0
  %488 = vmatprep.subr.bf16.mxu0 0
  %489 = vmatpush1.bf16.msra.mxu0 0
  %490 = vmatprep.subr.bf16.mxu0 0
  %491 = vmatpush1.bf16.msra.mxu0 0
  %492 = vmatprep.subr.bf16.mxu0 0
  %493 = vmatpush1.bf16.msra.mxu0 0
  %494 = vmatprep.subr.bf16.mxu0 0
  %495 = vmatpush1.bf16.msra.mxu0 %v456
  %496 = vmatprep.subr.bf16.mxu0 0
  %497 = vmatpush1.bf16.msra.mxu0 %v455
  %498 = vmatprep.subr.bf16.mxu0 0
  %499 = vmatpush1.bf16.msra.mxu0 %v454
  %500 = vmatprep.subr.bf16.mxu0 0
  %501 = vmatpush1.bf16.msra.mxu0 %v453
  %502 = vmatprep.subr.bf16.mxu0 0
  %503 = vmatpush2.bf16.msra.mxu0 0
  %504 = vmatprep.subr.bf16.mxu0 0
  %505 = vmatpush2.bf16.msra.mxu0 0
  %506 = vmatprep.subr.bf16.mxu0 0
  %507 = vmatpush2.bf16.msra.mxu0 0
  %508 = vmatprep.subr.bf16.mxu0 0
  %509 = vmatpush2.bf16.msra.mxu0 0
  %510 = vmatprep.subr.bf16.mxu0 0
  %511 = vmatpush2.bf16.msra.mxu0 0
  %512 = vmatprep.subr.bf16.mxu0 0
  %513 = vmatpush2.bf16.msra.mxu0 0
  %514 = vmatprep.subr.bf16.mxu0 0
  %515 = vmatpush2.bf16.msra.mxu0 0
  %516 = vmatprep.subr.bf16.mxu0 0
  %517 = vmatpush2.bf16.msra.mxu0 0
  %518 = vmatprep.mubr.bf16.mxu0 0
  %519 = vmatmul.mubr.bf16.gmra.mxu0 %v463
  %v520 = vpop.f32.mrf.mxu0
  %v521 = vadd.f32 0.0, %v520
  %v522 = vpop.f32.mrf.mxu0
  %v523 = vpop.f32.mrf.mxu0
  %v524 = vadd.f32 0.0, %v523
  %v525 = vpop.f32.mrf.mxu0
  %526 = vmatprep.mubr.bf16.mxu0 0
  %527 = vmatmul.mubr.bf16.gmra.mxu0 %v466
  %v528 = vpop.f32.mrf.mxu0
  %v529 = vadd.f32 0.0, %v528
  %v530 = vpop.f32.mrf.mxu0
  %v531 = vpop.f32.mrf.mxu0
  %v532 = vadd.f32 0.0, %v531
  %v533 = vpop.f32.mrf.mxu0
  %534 = vmatprep.mubr.bf16.mxu0 0
  %535 = vmatmul.mubr.bf16.gmra.mxu0 %v469
  %v536 = vpop.f32.mrf.mxu0
  %v537 = vadd.f32 0.0, %v536
  %v538 = vpop.f32.mrf.mxu0
  %v539 = vpop.f32.mrf.mxu0
  %v540 = vadd.f32 0.0, %v539
  %v541 = vpop.f32.mrf.mxu0
  %542 = vmatprep.mubr.bf16.mxu0 0
  %543 = vmatmul.mubr.bf16.gmra.mxu0 %v472
  %v544 = vpop.f32.mrf.mxu0
  %v545 = vadd.f32 0.0, %v544
  %v546 = vpop.f32.mrf.mxu0
  %v547 = vpop.f32.mrf.mxu0
  %v548 = vadd.f32 0.0, %v547
  %v549 = vpop.f32.mrf.mxu0
  %550 = vmatprep.mubr.bf16.mxu0 0
  %551 = vmatmul.mubr.bf16.gmra.mxu0 %v475
  %v552 = vpop.f32.mrf.mxu0
  %v553 = vadd.f32 0.0, %v552
  %v554 = vpop.f32.mrf.mxu0
  %v555 = vpop.f32.mrf.mxu0
  %v556 = vadd.f32 0.0, %v555
  %v557 = vpop.f32.mrf.mxu0
  %558 = vmatprep.mubr.bf16.mxu0 0
  %559 = vmatmul.mubr.bf16.gmra.mxu0 %v478
  %v560 = vpop.f32.mrf.mxu0
  %v561 = vadd.f32 0.0, %v560
  %v562 = vpop.f32.mrf.mxu0
  %v563 = vpop.f32.mrf.mxu0
  %v564 = vadd.f32 0.0, %v563
  %v565 = vpop.f32.mrf.mxu0
  %566 = vmatprep.mubr.bf16.mxu0 0
  %567 = vmatmul.mubr.bf16.gmra.mxu0 %v481
  %v568 = vpop.f32.mrf.mxu0
  %v569 = vadd.f32 0.0, %v568
  %v570 = vpop.f32.mrf.mxu0
  %v571 = vpop.f32.mrf.mxu0
  %v572 = vadd.f32 0.0, %v571
  %v573 = vpop.f32.mrf.mxu0
  %574 = vmatprep.mubr.bf16.mxu0 0
  %575 = vmatmul.mubr.bf16.gmra.mxu0 %v484
  %v576 = vpop.f32.mrf.mxu0
  %v577 = vadd.f32 0.0, %v576
  %v578 = vpop.f32.mrf.mxu0
  %v579 = vpop.f32.mrf.mxu0
  %v580 = vadd.f32 0.0, %v579
  %v581 = vpop.f32.mrf.mxu0
  %582 = vdwg.mxu0
  %583 = vst.msk [vmem:[%s4] sm:$0xff] %vm58, %v521
  %584 = vst.msk [vmem:[%s4 + $0x8] sm:$0xff] %vm58, %v524
  %585 = vst.msk [vmem:[%s4 + $0x10] sm:$0xff] %vm58, %v529
  %586 = vst.msk [vmem:[%s4 + $0x18] sm:$0xff] %vm58, %v532
  %587 = vst.msk [vmem:[%s4 + $0x20] sm:$0xff] %vm58, %v537
  %588 = vst.msk [vmem:[%s4 + $0x28] sm:$0xff] %vm58, %v540
  %589 = vst.msk [vmem:[%s4 + $0x30] sm:$0xff] %vm58, %v545
  %590 = vst.msk [vmem:[%s4 + $0x38] sm:$0xff] %vm58, %v548
  %591 = vst.msk [vmem:[%s4 + $0x40] sm:$0xff] %vm58, %v553
  %592 = vst.msk [vmem:[%s4 + $0x48] sm:$0xff] %vm58, %v556
  %593 = vst.msk [vmem:[%s4 + $0x50] sm:$0xff] %vm58, %v561
  %594 = vst.msk [vmem:[%s4 + $0x58] sm:$0xff] %vm58, %v564
  %595 = vst.msk [vmem:[%s4 + $0x60] sm:$0xff] %vm58, %v569
  %596 = vst.msk [vmem:[%s4 + $0x68] sm:$0xff] %vm58, %v572
  %597 = vst.msk [vmem:[%s4 + $0x70] sm:$0xff] %vm58, %v577
  %598 = vst.msk [vmem:[%s4 + $0x78] sm:$0xff] %vm58, %v580
  // Predicated region
  $region18: #{tpu_custom_call.1} parent=0 // pred_check
    _
  $region19: #{tpu_custom_call.1} parent=0 // pred_check_branch
    %600 = sbr.rel (0) target = $region21
  $region20: #{tpu_custom_call.1} parent=0 // pred_region
    _
  $region21: #{tpu_custom_call.1} parent=0 // pred_fallthru
    _
  // Predicated region
  $region22: #{tpu_custom_call.1} parent=0 // pred_check
    _
  $region23: #{tpu_custom_call.1} parent=0 // pred_check_branch
    %602 = sbr.rel (0) target = $region25
  $region24: #{tpu_custom_call.1} parent=0 // pred_region
    _
  $region25: #{tpu_custom_call.1} parent=0 // pred_fallthru
    _

</llo_original>
